<compile_context>
chip_gen: v5e
topology: v5e:2x2
jax: 0.10.0
libtpu: 0.0.40
codegen_flags: <defaults>
</compile_context>

<pallas_src>
import functools

import jax
import jax.numpy as jnp
from jax.experimental import pallas as pl
from jax.experimental.pallas import tpu as pltpu

BN_EPS = 1e-5  # nn.BatchNorm1d default eps


def _round_up(n, m):
    return -(-n // m) * m


def _make_kernel(fc1, fc2, action_dim):
    def kernel(x_ref, w1_ref, w2_ref, w3_ref, bias_ref, o_ref):
        x = x_ref[...]
        # Linear1 (+ folded BN1) + ReLU.  Dropout = identity in eval mode.
        h = jnp.dot(x, w1_ref[...], preferred_element_type=jnp.float32)
        h = jnp.maximum(h + bias_ref[0:1, 0:fc1], 0.0)
        # Linear2 (+ folded BN2) + ReLU.
        h = jnp.dot(h, w2_ref[...], preferred_element_type=jnp.float32)
        h = jnp.maximum(h + bias_ref[1:2, 0:fc2], 0.0)
        # Output Linear.
        o = jnp.dot(h, w3_ref[...], preferred_element_type=jnp.float32)
        o_ref[...] = (o + bias_ref[2:3, 0:action_dim]).astype(o_ref.dtype)

    return kernel


def fold_params(params, eps=BN_EPS):
    """Fold eval-mode BN into the preceding Linear; pack biases into one tile."""
    s1 = params["g1"] * jax.lax.rsqrt(params["v1"] + eps)           # (1, fc1)
    w1 = params["w1"] * s1                                           # (in, fc1)
    b1 = (params["b1"] - params["m1"]) * s1 + params["beta1"]        # (1, fc1)

    s2 = params["g2"] * jax.lax.rsqrt(params["v2"] + eps)            # (1, fc2)
    w2 = params["w2"] * s2                                           # (fc1, fc2)
    b2 = (params["b2"] - params["m2"]) * s2 + params["beta2"]        # (1, fc2)

    w3, b3 = params["w3"], params["b3"]
    fc1, fc2, action_dim = w1.shape[1], w2.shape[1], w3.shape[1]

    # One lane-dense (8, F) f32 tile holding b1 / b2 / b3 in rows 0/1/2.
    F = max(128, fc1, fc2, action_dim)
    bias_pack = jnp.zeros((8, F), jnp.float32)
    bias_pack = bias_pack.at[0, :fc1].set(b1[0])
    bias_pack = bias_pack.at[1, :fc2].set(b2[0])
    bias_pack = bias_pack.at[2, :action_dim].set(b3[0])

    return dict(w1=w1.astype(jnp.float32), w2=w2.astype(jnp.float32),
                w3=w3.astype(jnp.float32), bias=bias_pack)


@functools.partial(jax.jit, static_argnames=("tile_b",))
def qmodel_forward(x, folded, tile_b=128):
    """x: (B, state_dim) f32 -> (B, action_dim) f32, using folded params."""
    B, state_dim = x.shape
    fc1 = folded["w1"].shape[1]
    fc2 = folded["w2"].shape[1]
    action_dim = folded["w3"].shape[1]
    F = folded["bias"].shape[1]

    # Pick a batch tile that is a multiple of 8 and no larger than needed.
    tile_b = _round_up(min(tile_b, _round_up(B, 8)), 8)
    B_pad = _round_up(B, tile_b)
    if B_pad != B:
        x = jnp.pad(x, ((0, B_pad - B), (0, 0)))

    grid = (B_pad // tile_b,)
    kernel = _make_kernel(fc1, fc2, action_dim)

    out = pl.pallas_call(
        kernel,
        out_shape=jax.ShapeDtypeStruct((B_pad, action_dim), jnp.float32),
        grid_spec=pltpu.PrefetchScalarGridSpec(
            num_scalar_prefetch=0,
            grid=grid,
            in_specs=[
                # Activations: tiled over the batch grid (double-buffered).
                pl.BlockSpec((tile_b, state_dim), lambda i: (i, 0)),
                # Weights + packed biases: constant index_map -> VMEM-resident.
                pl.BlockSpec((state_dim, fc1), lambda i: (0, 0)),
                pl.BlockSpec((fc1, fc2), lambda i: (0, 0)),
                pl.BlockSpec((fc2, action_dim), lambda i: (0, 0)),
                pl.BlockSpec((8, F), lambda i: (0, 0)),
            ],
            out_specs=pl.BlockSpec((tile_b, action_dim), lambda i: (i, 0)),
        ),
        compiler_params=pltpu.CompilerParams(
            dimension_semantics=("parallel",)),  # v7x: shard batch over 2 TCs
    )(x, folded["w1"], folded["w2"], folded["w3"], folded["bias"])

    return out[:B]


def init_params(key, state_dim, action_dim, fc1=128, fc2=128):
    """Deterministic init mirroring nn.Linear / nn.BatchNorm1d defaults."""
    def linear(k, fan_in, fan_out):
        kw, kb = jax.random.split(k)
        bound = 1.0 / (fan_in ** 0.5)
        w = jax.random.uniform(kw, (fan_in, fan_out), jnp.float32, -bound, bound)
        b = jax.random.uniform(kb, (1, fan_out), jnp.float32, -bound, bound)
        return w, b

    k1, k2, k3, k4 = jax.random.split(key, 4)
    w1, b1 = linear(k1, state_dim, fc1)
    w2, b2 = linear(k2, fc1, fc2)
    w3, b3 = linear(k3, fc2, action_dim)

    # Non-trivial BN stats so the folding is actually exercised.
    def bn(k, f):
        kg, kb_, km, kv = jax.random.split(k, 4)
        return dict(g=1.0 + 0.1 * jax.random.normal(kg, (1, f), jnp.float32),
                    beta=0.1 * jax.random.normal(kb_, (1, f), jnp.float32),
                    m=0.1 * jax.random.normal(km, (1, f), jnp.float32),
                    v=1.0 + 0.1 * jax.random.uniform(kv, (1, f), jnp.float32))

    kb1, kb2 = jax.random.split(k4)
    bn1, bn2 = bn(kb1, fc1), bn(kb2, fc2)
    return dict(w1=w1, b1=b1, g1=bn1["g"], beta1=bn1["beta"], m1=bn1["m"], v1=bn1["v"],
                w2=w2, b2=b2, g2=bn2["g"], beta2=bn2["beta"], m2=bn2["m"], v2=bn2["v"],
                w3=w3, b3=b3)


def reference_forward(x, params, eps=BN_EPS):
    """Pure-JAX eval-mode reference (unfolded), mirrors PyTorch QModel.eval()."""
    h = x @ params["w1"] + params["b1"]
    h = (h - params["m1"]) * jax.lax.rsqrt(params["v1"] + eps) * params["g1"] + params["beta1"]
    h = jnp.maximum(h, 0.0)
    h = h @ params["w2"] + params["b2"]
    h = (h - params["m2"]) * jax.lax.rsqrt(params["v2"] + eps) * params["g2"] + params["beta2"]
    h = jnp.maximum(h, 0.0)
    return h @ params["w3"] + params["b3"]


if __name__ == "__main__":
    # Small shapes consistent with QModel(state_dim, action_dim, fc1, fc2):
    # lane-dense hidden widths (128), batch tiled over a 2-step grid.
    batch, state_dim, action_dim, fc1, fc2 = 64, 16, 4, 128, 128

    key = jax.random.PRNGKey(0)
    kx, kp = jax.random.split(key)
    x = jax.random.normal(kx, (batch, state_dim), jnp.float32)
    params = init_params(kp, state_dim, action_dim, fc1, fc2)

    folded = fold_params(params)
    out = qmodel_forward(x, folded, tile_b=32)
    jax.block_until_ready(out)

    assert out.shape == (batch, action_dim)
    ref = reference_forward(x, params)
    assert jnp.allclose(out, ref, atol=1e-4, rtol=1e-4), \
        f"max err {jnp.max(jnp.abs(out - ref))}"
    print("KERNEL_OK")
</pallas_src>

<mosaic_0001>
module attributes {stable_mosaic.version = 11 : i64} {
  func.func @kernel(%arg0: i32, %arg1: memref<32x16xf32, #tpu.memory_space<vmem>>, %arg2: memref<16x128xf32, #tpu.memory_space<vmem>>, %arg3: memref<128x128xf32, #tpu.memory_space<vmem>>, %arg4: memref<128x4xf32, #tpu.memory_space<vmem>>, %arg5: memref<8x128xf32, #tpu.memory_space<vmem>>, %arg6: memref<32x4xf32, #tpu.memory_space<vmem>>) attributes {dimension_semantics = [#tpu.dimension_semantics<parallel>], iteration_bounds = array<i64: 2>, scalar_prefetch = 0 : i64, scratch_operands = 0 : i64, tpu.core_type = #tpu.core_type<tc>, window_params = [{transform_indices = @transform_0, window_bounds = array<i64: 32, 16>}, {pipeline_mode = #tpu.pipeline_mode<synchronous>, transform_indices = @transform_1, window_bounds = array<i64: 16, 128>}, {pipeline_mode = #tpu.pipeline_mode<synchronous>, transform_indices = @transform_2, window_bounds = array<i64: 128, 128>}, {pipeline_mode = #tpu.pipeline_mode<synchronous>, transform_indices = @transform_3, window_bounds = array<i64: 128, 4>}, {pipeline_mode = #tpu.pipeline_mode<synchronous>, transform_indices = @transform_4, window_bounds = array<i64: 8, 128>}, {transform_indices = @transform_5, window_bounds = array<i64: 32, 4>}]} {
    %c0 = arith.constant 0 : index
    %c0_0 = arith.constant 0 : index
    %0 = vector.load %arg1[%c0, %c0_0] : memref<32x16xf32, #tpu.memory_space<vmem>>, vector<32x16xf32>
    %c0_1 = arith.constant 0 : index
    %c0_2 = arith.constant 0 : index
    %1 = vector.load %arg2[%c0_1, %c0_2] : memref<16x128xf32, #tpu.memory_space<vmem>>, vector<16x128xf32>
    %cst = arith.constant dense<0.000000e+00> : vector<32x128xf32>
    %2 = tpu.matmul %0, %1, %cst {dimension_numbers = #tpu.dot_dimension_numbers<[1], [0], [0], [1], [0, 0, 1, 1], [], []>} : vector<32x16xf32>, vector<16x128xf32>, vector<32x128xf32> -> vector<32x128xf32>
    %c0_3 = arith.constant 0 : index
    %c0_4 = arith.constant 0 : index
    %3 = vector.load %arg5[%c0_3, %c0_4] : memref<8x128xf32, #tpu.memory_space<vmem>>, vector<1x128xf32>
    %4 = vector.broadcast %3 : vector<1x128xf32> to vector<32x128xf32>
    %5 = arith.addf %2, %4 : vector<32x128xf32>
    %cst_5 = arith.constant 0.000000e+00 : f32
    %6 = vector.broadcast %cst_5 : f32 to vector<32x128xf32>
    %7 = arith.maximumf %5, %6 : vector<32x128xf32>
    %c0_6 = arith.constant 0 : index
    %c0_7 = arith.constant 0 : index
    %8 = vector.load %arg3[%c0_6, %c0_7] : memref<128x128xf32, #tpu.memory_space<vmem>>, vector<128x128xf32>
    %cst_8 = arith.constant dense<0.000000e+00> : vector<32x128xf32>
    %9 = tpu.matmul %7, %8, %cst_8 {dimension_numbers = #tpu.dot_dimension_numbers<[1], [0], [0], [1], [0, 0, 1, 1], [], []>} : vector<32x128xf32>, vector<128x128xf32>, vector<32x128xf32> -> vector<32x128xf32>
    %c1 = arith.constant 1 : index
    %c0_9 = arith.constant 0 : index
    %10 = vector.load %arg5[%c1, %c0_9] : memref<8x128xf32, #tpu.memory_space<vmem>>, vector<1x128xf32>
    %11 = vector.broadcast %10 : vector<1x128xf32> to vector<32x128xf32>
    %12 = arith.addf %9, %11 : vector<32x128xf32>
    %cst_10 = arith.constant 0.000000e+00 : f32
    %13 = vector.broadcast %cst_10 : f32 to vector<32x128xf32>
    %14 = arith.maximumf %12, %13 : vector<32x128xf32>
    %c0_11 = arith.constant 0 : index
    %c0_12 = arith.constant 0 : index
    %15 = vector.load %arg4[%c0_11, %c0_12] : memref<128x4xf32, #tpu.memory_space<vmem>>, vector<128x4xf32>
    %cst_13 = arith.constant dense<0.000000e+00> : vector<32x4xf32>
    %16 = tpu.matmul %14, %15, %cst_13 {dimension_numbers = #tpu.dot_dimension_numbers<[1], [0], [0], [1], [0, 0, 1, 1], [], []>} : vector<32x128xf32>, vector<128x4xf32>, vector<32x4xf32> -> vector<32x4xf32>
    %c2 = arith.constant 2 : index
    %c0_14 = arith.constant 0 : index
    %17 = vector.load %arg5[%c2, %c0_14] : memref<8x128xf32, #tpu.memory_space<vmem>>, vector<1x4xf32>
    %18 = vector.broadcast %17 : vector<1x4xf32> to vector<32x4xf32>
    %19 = arith.addf %16, %18 : vector<32x4xf32>
    %c0_15 = arith.constant 0 : index
    %c0_16 = arith.constant 0 : index
    %20 = vector.load %arg6[%c0_15, %c0_16] : memref<32x4xf32, #tpu.memory_space<vmem>>, vector<32x4xf32>
    tpu.vector_store %arg6[%c0_15, %c0_16], %19 {strides = array<i32>} : memref<32x4xf32, #tpu.memory_space<vmem>>, vector<32x4xf32>,
    return
  }
  func.func @transform_0(%arg0: i32) -> (i32, i32) {
    %c0_i32 = arith.constant 0 : i32
    %c0_i32_0 = arith.constant 0 : i32
    return %arg0, %c0_i32 : i32, i32
  }
  func.func @transform_1(%arg0: i32) -> (i32, i32) {
    %c0_i32 = arith.constant 0 : i32
    %c0_i32_0 = arith.constant 0 : i32
    %c0_i32_1 = arith.constant 0 : i32
    return %c0_i32, %c0_i32_0 : i32, i32
  }
  func.func @transform_2(%arg0: i32) -> (i32, i32) {
    %c0_i32 = arith.constant 0 : i32
    %c0_i32_0 = arith.constant 0 : i32
    %c0_i32_1 = arith.constant 0 : i32
    return %c0_i32, %c0_i32_0 : i32, i32
  }
  func.func @transform_3(%arg0: i32) -> (i32, i32) {
    %c0_i32 = arith.constant 0 : i32
    %c0_i32_0 = arith.constant 0 : i32
    %c0_i32_1 = arith.constant 0 : i32
    return %c0_i32, %c0_i32_0 : i32, i32
  }
  func.func @transform_4(%arg0: i32) -> (i32, i32) {
    %c0_i32 = arith.constant 0 : i32
    %c0_i32_0 = arith.constant 0 : i32
    %c0_i32_1 = arith.constant 0 : i32
    return %c0_i32, %c0_i32_0 : i32, i32
  }
  func.func @transform_5(%arg0: i32) -> (i32, i32) {
    %c0_i32 = arith.constant 0 : i32
    %c0_i32_0 = arith.constant 0 : i32
    return %arg0, %c0_i32 : i32, i32
  }
}

</mosaic_0001>

<llo_original>
// kernel: qmodel_forward.1
$region0: #{qmodel_forward.1}
  #allocation0 [shape = 'u32[]', space=smem, size = 0x4, offset = 0x4, fixed_abs, tag = 'smem constant byte address 0x4 - core index']
  #allocation1 [shape = 'u32[72,128]{1,0:T(1,128)}', space=vmem, size = 0x9000, scoped, tag = 'internal scratch']
  %s0 = inlined_call_operand.vmem [shape: f32[64,16], index: 0, kind: input, shape index: {}]
  %s1 = inlined_call_operand.vmem [shape: f32[16,128], index: 1, kind: input, shape index: {}]
  %s2 = inlined_call_operand.vmem [shape: f32[128,128], index: 2, kind: input, shape index: {}]
  %s3 = inlined_call_operand.vmem [shape: f32[128,4], index: 3, kind: input, shape index: {}]
  %s4 = inlined_call_operand.vmem [shape: f32[8,128], index: 4, kind: input, shape index: {}]
  %s5 = inlined_call_operand.vmem [shape: f32[64,4], index: 5, kind: output, shape index: {}]
  %s6 = sld [smem:[#allocation0]]
  $region53: #{qmodel_forward.1} parent=0
    _
  %s8 = ssub.s32 1, %s6
  %s9 = scalar_select 0, %s8, %s6
  loop: start=0, step=1, limit=4
  $region2: #{qmodel_forward.1} parent=0 // loop_pre_header
    _
  $region3: #{qmodel_forward.1} parent=0 // loop_header
    %s11 = sphi 0, %s15
    %p12 = scmp.ge.s32.totalorder %s11, 4
    %s21 = sphi 0, %s23
    %s24 = sphi 0, %s21
    %s25 = sphi 0, %s24
    %s41 = sphi 0, %s25
    %s45 = sphi 0, %s45
    %s47 = sphi 0, %s45
    %s48 = sphi 0, %s47
    %s62 = sphi 0, %s48
    %s66 = sphi 0, %s66
    %s68 = sphi 0, %s66
    %s69 = sphi 0, %s68
    %s83 = sphi 0, %s69
    %s87 = sphi 0, %s87
    %s89 = sphi 0, %s87
    %s90 = sphi 0, %s89
    %s104 = sphi 0, %s90
    %s108 = sphi 0, %s108
    %s110 = sphi 0, %s108
    %s111 = sphi 0, %s110
    %s125 = sphi 0, %s111
    %s131 = sphi 0, %s133
    %s134 = sphi 0, %s131
    %s135 = sphi 0, %s134
    %s151 = sphi 0, %s135
  $region4: #{qmodel_forward.1} parent=0 // loop_header_branch
    %14 = sbr.rel (%p12) target = $region8
  $region5: #{qmodel_forward.1} parent=0 // loop_body
    %s16 = ssub.s32 %s11, 1
    %s17 = ssub.s32 %s11, 2
    %s18 = sadd.s32 %s11, 1
    %s19 = ssub.s32 %s11, %s18
    %p20 = scmp.eq.s32.totalorder %s19, 0
    %s22 = sadd.s32 %s21, 1
    %s23 = scalar_select %p20, %s21, %s22
    %p26 = pneg %p20
    %p27 = scmp.eq.s32.totalorder %s11, 1
    %p28 = por %p26, %p27
    %p29 = scmp.ne.s32.totalorder %s21, %s24
    %p30 = scmp.eq.s32.totalorder %s11, 0
    %p31 = por %p29, %p30
    %p32 = scmp.ne.s32.totalorder %s21, %s24
    %p33 = scmp.eq.s32.totalorder %s16, 1
    %p34 = por %p32, %p33
    %p35 = scmp.ne.s32.totalorder %s24, %s25
    %p36 = scmp.eq.s32.totalorder %s16, 0
    %p37 = por %p35, %p36
    %p38 = scmp.ne.s32.totalorder %s24, %s25
    %p39 = scmp.eq.s32.totalorder %s17, 1
    %p40 = por %p38, %p39
    %p42 = scmp.ne.s32.totalorder %s25, %s41
    %p43 = scmp.eq.s32.totalorder %s17, 0
    %p44 = por %p42, %p43
    %s46 = sadd.s32 %s45, 1
    %p49 = scmp.eq.s32.totalorder %s11, 1
    %p50 = scmp.ne.s32.totalorder %s45, %s47
    %p51 = scmp.eq.s32.totalorder %s11, 0
    %p52 = por %p50, %p51
    %p53 = scmp.ne.s32.totalorder %s45, %s47
    %p54 = scmp.eq.s32.totalorder %s16, 1
    %p55 = por %p53, %p54
    %p56 = scmp.ne.s32.totalorder %s47, %s48
    %p57 = scmp.eq.s32.totalorder %s16, 0
    %p58 = por %p56, %p57
    %p59 = scmp.ne.s32.totalorder %s47, %s48
    %p60 = scmp.eq.s32.totalorder %s17, 1
    %p61 = por %p59, %p60
    %p63 = scmp.ne.s32.totalorder %s48, %s62
    %p64 = scmp.eq.s32.totalorder %s17, 0
    %p65 = por %p63, %p64
    %s67 = sadd.s32 %s66, 1
    %p70 = scmp.eq.s32.totalorder %s11, 1
    %p71 = scmp.ne.s32.totalorder %s66, %s68
    %p72 = scmp.eq.s32.totalorder %s11, 0
    %p73 = por %p71, %p72
    %p74 = scmp.ne.s32.totalorder %s66, %s68
    %p75 = scmp.eq.s32.totalorder %s16, 1
    %p76 = por %p74, %p75
    %p77 = scmp.ne.s32.totalorder %s68, %s69
    %p78 = scmp.eq.s32.totalorder %s16, 0
    %p79 = por %p77, %p78
    %p80 = scmp.ne.s32.totalorder %s68, %s69
    %p81 = scmp.eq.s32.totalorder %s17, 1
    %p82 = por %p80, %p81
    %p84 = scmp.ne.s32.totalorder %s69, %s83
    %p85 = scmp.eq.s32.totalorder %s17, 0
    %p86 = por %p84, %p85
    %s88 = sadd.s32 %s87, 1
    %p91 = scmp.eq.s32.totalorder %s11, 1
    %p92 = scmp.ne.s32.totalorder %s87, %s89
    %p93 = scmp.eq.s32.totalorder %s11, 0
    %p94 = por %p92, %p93
    %p95 = scmp.ne.s32.totalorder %s87, %s89
    %p96 = scmp.eq.s32.totalorder %s16, 1
    %p97 = por %p95, %p96
    %p98 = scmp.ne.s32.totalorder %s89, %s90
    %p99 = scmp.eq.s32.totalorder %s16, 0
    %p100 = por %p98, %p99
    %p101 = scmp.ne.s32.totalorder %s89, %s90
    %p102 = scmp.eq.s32.totalorder %s17, 1
    %p103 = por %p101, %p102
    %p105 = scmp.ne.s32.totalorder %s90, %s104
    %p106 = scmp.eq.s32.totalorder %s17, 0
    %p107 = por %p105, %p106
    %s109 = sadd.s32 %s108, 1
    %p112 = scmp.eq.s32.totalorder %s11, 1
    %p113 = scmp.ne.s32.totalorder %s108, %s110
    %p114 = scmp.eq.s32.totalorder %s11, 0
    %p115 = por %p113, %p114
    %p116 = scmp.ne.s32.totalorder %s108, %s110
    %p117 = scmp.eq.s32.totalorder %s16, 1
    %p118 = por %p116, %p117
    %p119 = scmp.ne.s32.totalorder %s110, %s111
    %p120 = scmp.eq.s32.totalorder %s16, 0
    %p121 = por %p119, %p120
    %p122 = scmp.ne.s32.totalorder %s110, %s111
    %p123 = scmp.eq.s32.totalorder %s17, 1
    %p124 = por %p122, %p123
    %p126 = scmp.ne.s32.totalorder %s111, %s125
    %p127 = scmp.eq.s32.totalorder %s17, 0
    %p128 = por %p126, %p127
    %s129 = ssub.s32 %s11, %s18
    %p130 = scmp.eq.s32.totalorder %s129, 0
    %s132 = sadd.s32 %s131, 1
    %s133 = scalar_select %p130, %s131, %s132
    %p136 = pneg %p130
    %p137 = scmp.eq.s32.totalorder %s11, 1
    %p138 = por %p136, %p137
    %p139 = scmp.ne.s32.totalorder %s131, %s134
    %p140 = scmp.eq.s32.totalorder %s11, 0
    %p141 = por %p139, %p140
    %p142 = scmp.ne.s32.totalorder %s131, %s134
    %p143 = scmp.eq.s32.totalorder %s16, 1
    %p144 = por %p142, %p143
    %p145 = scmp.ne.s32.totalorder %s134, %s135
    %p146 = scmp.eq.s32.totalorder %s16, 0
    %p147 = por %p145, %p146
    %p148 = scmp.ne.s32.totalorder %s134, %s135
    %p149 = scmp.eq.s32.totalorder %s17, 1
    %p150 = por %p148, %p149
    %p152 = scmp.ne.s32.totalorder %s135, %s151
    %p153 = scmp.eq.s32.totalorder %s17, 0
    %p154 = por %p152, %p153
    %p155 = scmp.le.s32.totalorder 1, %s11
    %p156 = scmp.lt.s32.totalorder %s11, 3
    %p157 = pnand %p155, %p156
    %p158 = pneg %p157
    // Predicated region
    $region9: #{qmodel_forward.1} parent=5 // pred_check
      _
    $region10: #{qmodel_forward.1} parent=5 // pred_check_branch
      %160 = sbr.rel (%p157) target = $region12
    $region11: #{qmodel_forward.1} parent=5 // pred_region
      %s161 = ssub.s32 %s11, 1
      // Predicated region
      $region13: #{qmodel_forward.1} parent=11 // pred_check
        %p162 = pneg %p58
      $region14: #{qmodel_forward.1} parent=11 // pred_check_branch
        %164 = sbr.rel (%p162) target = $region16
      $region15: #{qmodel_forward.1} parent=11 // pred_region
        _
      $region16: #{qmodel_forward.1} parent=11 // pred_fallthru
        _
      // Predicated region
      $region17: #{qmodel_forward.1} parent=11 // pred_check
        %p165 = pneg %p79
      $region18: #{qmodel_forward.1} parent=11 // pred_check_branch
        %167 = sbr.rel (%p165) target = $region20
      $region19: #{qmodel_forward.1} parent=11 // pred_region
        _
      $region20: #{qmodel_forward.1} parent=11 // pred_fallthru
        _
      // Predicated region
      $region21: #{qmodel_forward.1} parent=11 // pred_check
        %p168 = pneg %p100
      $region22: #{qmodel_forward.1} parent=11 // pred_check_branch
        %170 = sbr.rel (%p168) target = $region24
      $region23: #{qmodel_forward.1} parent=11 // pred_region
        _
      $region24: #{qmodel_forward.1} parent=11 // pred_fallthru
        _
      // Predicated region
      $region25: #{qmodel_forward.1} parent=11 // pred_check
        %p171 = pneg %p121
      $region26: #{qmodel_forward.1} parent=11 // pred_check_branch
        %173 = sbr.rel (%p171) target = $region28
      $region27: #{qmodel_forward.1} parent=11 // pred_region
        _
      $region28: #{qmodel_forward.1} parent=11 // pred_fallthru
        _
    $region12: #{qmodel_forward.1} parent=5 // pred_fallthru
      _
    %p174 = scmp.lt.s32.totalorder %s11, 2
    // Predicated region
    $region29: #{qmodel_forward.1} parent=5 // pred_check
      %p175 = pneg %p174
    $region30: #{qmodel_forward.1} parent=5 // pred_check_branch
      %177 = sbr.rel (%p175) target = $region32
    $region31: #{qmodel_forward.1} parent=5 // pred_region
      // Predicated region
      $region33: #{qmodel_forward.1} parent=31 // pred_check
        %p178 = pneg %p31
      $region34: #{qmodel_forward.1} parent=31 // pred_check_branch
        %180 = sbr.rel (%p178) target = $region36
      $region35: #{qmodel_forward.1} parent=31 // pred_region
        %s181 = smul.u32 4, %s11
        %p182 = scmp.lt.s32.totalorder %s181, 7
        %s183 = scalar_select %p182, %s181, 7
        %s184 = smul.addr %s183, 8
        %s185 = scalar_lea.vmem %s0, %s184
        %s186 = smul.u32 4, %s11
      $region36: #{qmodel_forward.1} parent=31 // pred_fallthru
        _
    $region32: #{qmodel_forward.1} parent=5 // pred_fallthru
      _
    %p187 = scmp.le.s32.totalorder 1, %s11
    %p188 = scmp.lt.s32.totalorder %s11, 3
    %p189 = pnand %p187, %p188
    %p190 = pneg %p189
    // Predicated region
    $region37: #{qmodel_forward.1} parent=5 // pred_check
      _
    $region38: #{qmodel_forward.1} parent=5 // pred_check_branch
      %192 = sbr.rel (%p189) target = $region40
    $region39: #{qmodel_forward.1} parent=5 // pred_region
      %s193 = ssub.s32 %s11, 1
      %s194 = smul.u32 4, %s16
      %p195 = scmp.lt.s32.totalorder %s194, 7
      %s196 = scalar_select %p195, %s194, 7
      %s197 = smul.addr %s196, 8
      %s198 = scalar_lea.vmem %s0, %s197
      %p199 = pneg %p37
      %p200 = pneg %p34
      %p201 = pneg %p58
      %p202 = pneg %p55
      %p203 = pneg %p79
      %p204 = pneg %p76
      %p205 = pneg %p100
      %p206 = pneg %p97
      %p207 = pneg %p121
      %p208 = pneg %p118
      %p209 = pneg %p147
      %p210 = pneg %p144
      %s211 = smul.u32 4, %s16
      %p212 = scmp.lt.s32.totalorder %s211, 7
      %s213 = scalar_select %p212, %s211, 7
      %s214 = smul.addr %s213, 8
      %s215 = scalar_lea.vmem %s5, %s214
      %s216 = smul.u32 4, %s16
      %p217 = scmp.lt.s32.totalorder %s216, 7
      %s218 = scalar_select %p217, %s216, 7
      %s219 = smul.addr %s218, 8
      %s220 = scalar_lea.vmem %s0, %s219
      %s221 = smul.u32 4, %s16
      %s222 = smul.u32 4, %s16
      %p223 = scmp.lt.s32.totalorder %s222, 7
      %s224 = scalar_select %p223, %s222, 7
      %s225 = smul.addr %s224, 8
      %s226 = scalar_lea.vmem %s5, %s225
      %s227 = smul.u32 4, %s16
      %v228 = vld [vmem:[%s220] sm:$0xff]
      %v229 = vld [vmem:[%s220 + $0x8] sm:$0xff]
      %v230 = vld [vmem:[%s220 + $0x10] sm:$0xff]
      %v231 = vld [vmem:[%s220 + $0x18] sm:$0xff]
      %v232 = vld [vmem:[%s1] sm:$0xff]
      %v233 = vld [vmem:[%s1 + $0x8] sm:$0xff]
      %v234 = vld [vmem:[%s4] sm:$0x1]
      %v235 = vperm.slane %v234, 0
      %vm236 = vcmask 130048
      %v238 = vsel %vm236, %v228, 0
      %v241 = vsel %vm236, %v229, 0
      %v244 = vsel %vm236, %v230, 0
      %v247 = vsel %vm236, %v231, 0
      %249 = vmatpush.msra.mxu0 0.0
      %250 = vmatpush.msra.mxu0 0.0
      %251 = vmatpush.msra.mxu0 0.0
      %252 = vmatpush.msra.mxu0 0.0
      %253 = vmatpush.msra.mxu0 0.0
      %254 = vmatpush.msra.mxu0 0.0
      %255 = vmatpush.msra.mxu0 0.0
      %256 = vmatpush.msra.mxu0 0.0
      %257 = vmatpush.msra.mxu0 0.0
      %258 = vmatpush.msra.mxu0 0.0
      %259 = vmatpush.msra.mxu0 0.0
      %260 = vmatpush.msra.mxu0 0.0
      %261 = vmatpush.msra.mxu0 0.0
      %262 = vmatpush.msra.mxu0 0.0
      %263 = vmatpush.msra.mxu0 %v233
      %264 = vmatpush.msra.mxu0 %v232
      %265 = vmatmul.f32.gmra.mxu0 %v238
      %v266 = vpop.f32.mrf.mxu0
      %v267 = vadd.f32 %v235, %v266
      %268 = vmatmul.f32.gmra.mxu0 %v241
      %v269 = vpop.f32.mrf.mxu0
      %v270 = vadd.f32 %v235, %v269
      %271 = vmatmul.f32.gmra.mxu0 %v244
      %v272 = vpop.f32.mrf.mxu0
      %v273 = vadd.f32 %v235, %v272
      %274 = vmatmul.f32.gmra.mxu0 %v247
      %v275 = vpop.f32.mrf.mxu0
      %v276 = vadd.f32 %v235, %v275
      %277 = vdwg.mxu0
      %v278 = vmax.f32 %v267, 0.0
      %v279 = vmax.f32 %v270, 0.0
      %v280 = vmax.f32 %v273, 0.0
      %v281 = vmax.f32 %v276, 0.0
      %v282 = vld [vmem:[%s2] sm:$0xff]
      %v283 = vld [vmem:[%s2 + $0x8] sm:$0xff]
      %v284 = vld [vmem:[%s2 + $0x10] sm:$0xff]
      %v285 = vld [vmem:[%s2 + $0x18] sm:$0xff]
      %v286 = vld [vmem:[%s2 + $0x20] sm:$0xff]
      %v287 = vld [vmem:[%s2 + $0x28] sm:$0xff]
      %v288 = vld [vmem:[%s2 + $0x30] sm:$0xff]
      %v289 = vld [vmem:[%s2 + $0x38] sm:$0xff]
      %v290 = vld [vmem:[%s2 + $0x40] sm:$0xff]
      %v291 = vld [vmem:[%s2 + $0x48] sm:$0xff]
      %v292 = vld [vmem:[%s2 + $0x50] sm:$0xff]
      %v293 = vld [vmem:[%s2 + $0x58] sm:$0xff]
      %v294 = vld [vmem:[%s2 + $0x60] sm:$0xff]
      %v295 = vld [vmem:[%s2 + $0x68] sm:$0xff]
      %v296 = vld [vmem:[%s2 + $0x70] sm:$0xff]
      %v297 = vld [vmem:[%s2 + $0x78] sm:$0xff]
      %v298 = vld [vmem:[%s4 + $0x1] sm:$0x1]
      %v299 = vperm.slane %v298, 0
      %300 = vmatpush.msra.mxu0 %v297
      %301 = vmatpush.msra.mxu0 %v296
      %302 = vmatpush.msra.mxu0 %v295
      %303 = vmatpush.msra.mxu0 %v294
      %304 = vmatpush.msra.mxu0 %v293
      %305 = vmatpush.msra.mxu0 %v292
      %306 = vmatpush.msra.mxu0 %v291
      %307 = vmatpush.msra.mxu0 %v290
      %308 = vmatpush.msra.mxu0 %v289
      %309 = vmatpush.msra.mxu0 %v288
      %310 = vmatpush.msra.mxu0 %v287
      %311 = vmatpush.msra.mxu0 %v286
      %312 = vmatpush.msra.mxu0 %v285
      %313 = vmatpush.msra.mxu0 %v284
      %314 = vmatpush.msra.mxu0 %v283
      %315 = vmatpush.msra.mxu0 %v282
      %316 = vmatmul.f32.gmra.mxu0 %v278
      %v317 = vpop.f32.mrf.mxu0
      %v318 = vadd.f32 %v299, %v317
      %319 = vmatmul.f32.gmra.mxu0 %v279
      %v320 = vpop.f32.mrf.mxu0
      %v321 = vadd.f32 %v299, %v320
      %322 = vmatmul.f32.gmra.mxu0 %v280
      %v323 = vpop.f32.mrf.mxu0
      %v324 = vadd.f32 %v299, %v323
      %325 = vmatmul.f32.gmra.mxu0 %v281
      %v326 = vpop.f32.mrf.mxu0
      %v327 = vadd.f32 %v299, %v326
      %328 = vdwg.mxu0
      %v329 = vmax.f32 %v318, 0.0
      %v330 = vmax.f32 %v321, 0.0
      %v331 = vmax.f32 %v324, 0.0
      %v332 = vmax.f32 %v327, 0.0
      %v333 = vld [vmem:[%s3] sm:$0xff]
      %v334 = vld [vmem:[%s3 + $0x8] sm:$0xff]
      %v335 = vld [vmem:[%s3 + $0x10] sm:$0xff]
      %v336 = vld [vmem:[%s3 + $0x18] sm:$0xff]
      %v337 = vld [vmem:[%s3 + $0x20] sm:$0xff]
      %v338 = vld [vmem:[%s3 + $0x28] sm:$0xff]
      %v339 = vld [vmem:[%s3 + $0x30] sm:$0xff]
      %v340 = vld [vmem:[%s3 + $0x38] sm:$0xff]
      %v341 = vld [vmem:[%s3 + $0x40] sm:$0xff]
      %v342 = vld [vmem:[%s3 + $0x48] sm:$0xff]
      %v343 = vld [vmem:[%s3 + $0x50] sm:$0xff]
      %v344 = vld [vmem:[%s3 + $0x58] sm:$0xff]
      %v345 = vld [vmem:[%s3 + $0x60] sm:$0xff]
      %v346 = vld [vmem:[%s3 + $0x68] sm:$0xff]
      %v347 = vld [vmem:[%s3 + $0x70] sm:$0xff]
      %v348 = vld [vmem:[%s3 + $0x78] sm:$0xff]
      %v349 = vld [vmem:[%s4 + $0x2] sm:$0x1]
      %v350 = vperm.slane %v349, 0
      %351 = vmatpush.msra.mxu0 %v348
      %352 = vmatpush.msra.mxu0 %v347
      %353 = vmatpush.msra.mxu0 %v346
      %354 = vmatpush.msra.mxu0 %v345
      %355 = vmatpush.msra.mxu0 %v344
      %356 = vmatpush.msra.mxu0 %v343
      %357 = vmatpush.msra.mxu0 %v342
      %358 = vmatpush.msra.mxu0 %v341
      %359 = vmatpush.msra.mxu0 %v340
      %360 = vmatpush.msra.mxu0 %v339
      %361 = vmatpush.msra.mxu0 %v338
      %362 = vmatpush.msra.mxu0 %v337
      %363 = vmatpush.msra.mxu0 %v336
      %364 = vmatpush.msra.mxu0 %v335
      %365 = vmatpush.msra.mxu0 %v334
      %366 = vmatpush.msra.mxu0 %v333
      %367 = vmatmul.f32.gmra.mxu0 %v329
      %v368 = vpop.f32.mrf.mxu0
      %v369 = vadd.f32 %v350, %v368
      %370 = vmatmul.f32.gmra.mxu0 %v330
      %v371 = vpop.f32.mrf.mxu0
      %v372 = vadd.f32 %v350, %v371
      %373 = vmatmul.f32.gmra.mxu0 %v331
      %v374 = vpop.f32.mrf.mxu0
      %v375 = vadd.f32 %v350, %v374
      %376 = vmatmul.f32.gmra.mxu0 %v332
      %v377 = vpop.f32.mrf.mxu0
      %v378 = vadd.f32 %v350, %v377
      %379 = vdwg.mxu0
      %vm380 = vcmask 31744
      %381 = vst.msk [vmem:[%s226] sm:$0xff] %vm380, %v369
      %382 = vst.msk [vmem:[%s226 + $0x8] sm:$0xff] %vm380, %v372
      %383 = vst.msk [vmem:[%s226 + $0x10] sm:$0xff] %vm380, %v375
      %384 = vst.msk [vmem:[%s226 + $0x18] sm:$0xff] %vm380, %v378
      %s385 = smul.u32 4, %s16
      %p386 = scmp.lt.s32.totalorder %s385, 7
      %s387 = scalar_select %p386, %s385, 7
      %s388 = smul.addr %s387, 8
      %s389 = scalar_lea.vmem %s5, %s388
      // Predicated region
      $region41: #{qmodel_forward.1} parent=39 // pred_check
        %p390 = pneg %p144
      $region42: #{qmodel_forward.1} parent=39 // pred_check_branch
        %392 = sbr.rel (%p390) target = $region44
      $region43: #{qmodel_forward.1} parent=39 // pred_region
        %s393 = smul.u32 4, %s16
      $region44: #{qmodel_forward.1} parent=39 // pred_fallthru
        _
    $region40: #{qmodel_forward.1} parent=5 // pred_fallthru
      _
    %p394 = scmp.le.s32.totalorder 2, %s11
    // Predicated region
    $region45: #{qmodel_forward.1} parent=5 // pred_check
      %p395 = pneg %p394
    $region46: #{qmodel_forward.1} parent=5 // pred_check_branch
      %397 = sbr.rel (%p395) target = $region48
    $region47: #{qmodel_forward.1} parent=5 // pred_region
      %s398 = ssub.s32 %s11, 2
      // Predicated region
      $region49: #{qmodel_forward.1} parent=47 // pred_check
        %p399 = pneg %p150
      $region50: #{qmodel_forward.1} parent=47 // pred_check_branch
        %401 = sbr.rel (%p399) target = $region52
      $region51: #{qmodel_forward.1} parent=47 // pred_region
        %s402 = smul.u32 4, %s17
        %p403 = scmp.lt.s32.totalorder %s402, 7
        %s404 = scalar_select %p403, %s402, 7
        %s405 = smul.addr %s404, 8
        %s406 = scalar_lea.vmem %s5, %s405
      $region52: #{qmodel_forward.1} parent=47 // pred_fallthru
        _
    $region48: #{qmodel_forward.1} parent=5 // pred_fallthru
      _
  $region6: #{qmodel_forward.1} parent=0 // loop_footer
    %s15 = sadd.s32 1, %s11
  $region7: #{qmodel_forward.1} parent=0 // loop_footer_branch
    %10 = sbr.rel target = $region3
  $region8: #{qmodel_forward.1} parent=0 // loop_exit
    _

</llo_original>
